<compile_context>
chip_gen: v7x
topology: tpu7x:2x2x1
jax: 0.10.0
libtpu: 0.0.40
codegen_flags: <defaults>
</compile_context>

<pallas_src>
import jax
import jax.numpy as jnp
from jax.experimental import pallas as pl
from jax.experimental.pallas import tpu as pltpu

H, W = 10, 10
CIN, CMID, COUT = 16, 32, 16
KH, KW = 3, 3
NPATCH = H * W           # 100 output pixels
KDIM = KH * KW * CIN     # 144 contraction dim (im2col)


def fused_conv_kernel(w_ref, p_ref, b_ref, o_ref):
    # w_ref: (COUT, KDIM)    fused (conv2 o conv1) weights
    # p_ref: (KDIM, NPATCH)  transposed im2col patch matrix
    # b_ref: (COUT, 1)       fused bias (lane-broadcast in the add)
    # o_ref: (COUT, NPATCH)  output slab -> reshapes directly to (COUT, H, W)
    o_ref[...] = (
        jnp.dot(w_ref[...], p_ref[...], preferred_element_type=jnp.float32)
        + b_ref[...]
    ).astype(o_ref.dtype)


def prepare_params(w1, b1, w2, b2):
    """One-time weight prep: fuse the two convs, lay out for the CxN matmul."""
    w2m = w2[:, :, 0, 0]                                   # (COUT, CMID)
    w_fused = jnp.einsum('om,mikl->oikl', w2m, w1)         # (COUT, CIN, KH, KW)
    b_fused = b2 + w2m @ b1                                # (COUT,)
    # Column index of Wmat = (kh*KW + kw)*CIN + ci  -> transpose to (O, KH, KW, CIN)
    wf_mat = jnp.transpose(w_fused, (0, 2, 3, 1)).reshape(COUT, KDIM)
    return wf_mat.astype(jnp.float32), b_fused.reshape(COUT, 1).astype(jnp.float32)


@jax.jit
def model_forward(x_nchw, wf_mat, bf_col):
    """x_nchw: (1, CIN, H, W) -> (1, COUT, H, W)."""
    # Prologue (fused by XLA): zero-pad the CHW image and build patchesT
    # directly in (tap*CIN + ci, pixel) order — no layout transposes.
    x_pad = jnp.pad(x_nchw[0], ((0, 0), (1, 1), (1, 1)))   # (CIN, H+2, W+2)
    patches_t = jnp.concatenate(
        [x_pad[:, kh:kh + H, kw:kw + W].reshape(CIN, NPATCH)
         for kh in range(KH) for kw in range(KW)],
        axis=0,
    )                                                      # (KDIM, NPATCH)

    vmem = pl.BlockSpec(memory_space=pltpu.MemorySpace.VMEM)
    nbytes = 4 * (COUT * KDIM + KDIM * NPATCH + COUT + COUT * NPATCH)
    out_slab = pl.pallas_call(
        fused_conv_kernel,
        out_shape=jax.ShapeDtypeStruct((COUT, NPATCH), jnp.float32),
        in_specs=[vmem, vmem, vmem],
        out_specs=vmem,
        cost_estimate=pl.CostEstimate(
            flops=2 * COUT * KDIM * NPATCH,
            transcendentals=0,
            bytes_accessed=nbytes,
        ),
    )(wf_mat, patches_t, bf_col)

    # Epilogue: free reshape, already channel-major.
    return out_slab.reshape(COUT, H, W)[None]              # (1, COUT, H, W)


def reference_forward(x, w1, b1, w2, b2):
    dn = ('NCHW', 'OIHW', 'NCHW')
    t1 = jax.lax.conv_general_dilated(x, w1, (1, 1), ((1, 1), (1, 1)),
                                      dimension_numbers=dn)
    t1 = t1 + b1[None, :, None, None]
    t2 = jax.lax.conv_general_dilated(t1, w2, (1, 1), ((0, 0), (0, 0)),
                                      dimension_numbers=dn)
    return t2 + b2[None, :, None, None]


if __name__ == "__main__":
    key = jax.random.PRNGKey(0)
    kx, k1, kb1, k2, kb2 = jax.random.split(key, 5)

    x1 = jax.random.normal(kx, (1, CIN, H, W), dtype=jnp.float32)

    # Deterministic parameter init (Conv2d-like uniform fan-in scaling).
    fan1 = CIN * KH * KW
    w1 = jax.random.uniform(k1, (CMID, CIN, KH, KW), jnp.float32,
                            -1.0 / fan1 ** 0.5, 1.0 / fan1 ** 0.5)
    b1 = jax.random.uniform(kb1, (CMID,), jnp.float32,
                            -1.0 / fan1 ** 0.5, 1.0 / fan1 ** 0.5)
    fan2 = CMID
    w2 = jax.random.uniform(k2, (COUT, CMID, 1, 1), jnp.float32,
                            -1.0 / fan2 ** 0.5, 1.0 / fan2 ** 0.5)
    b2 = jax.random.uniform(kb2, (COUT,), jnp.float32,
                            -1.0 / fan2 ** 0.5, 1.0 / fan2 ** 0.5)

    # One-time weight fusion / layout prep (hoisted out of the forward pass).
    wf_mat, bf_col = prepare_params(w1, b1, w2, b2)
    wf_mat, bf_col = jax.block_until_ready((wf_mat, bf_col))

    out = model_forward(x1, wf_mat, bf_col)
    out = jax.block_until_ready(out)
    assert out.shape == (1, COUT, H, W), out.shape

    ref = jax.block_until_ready(reference_forward(x1, w1, b1, w2, b2))
    assert jnp.allclose(out, ref, atol=1e-4, rtol=1e-4), \
        float(jnp.max(jnp.abs(out - ref)))

    print("KERNEL_OK")
</pallas_src>

<mosaic_0001>
module attributes {stable_mosaic.version = 11 : i64} {
  func.func @fused_conv_kernel(%arg0: memref<16x144xf32, #tpu.memory_space<vmem>>, %arg1: memref<144x100xf32, #tpu.memory_space<vmem>>, %arg2: memref<16x1xf32, #tpu.memory_space<vmem>>, %arg3: memref<16x100xf32, #tpu.memory_space<vmem>>) attributes {dimension_semantics = [], scalar_prefetch = 0 : i64, scratch_operands = 0 : i64, tpu.core_type = #tpu.core_type<tc>} {
    %c0 = arith.constant 0 : index
    %c0_0 = arith.constant 0 : index
    %0 = vector.load %arg0[%c0, %c0_0] : memref<16x144xf32, #tpu.memory_space<vmem>>, vector<16x144xf32>
    %c0_1 = arith.constant 0 : index
    %c0_2 = arith.constant 0 : index
    %1 = vector.load %arg1[%c0_1, %c0_2] : memref<144x100xf32, #tpu.memory_space<vmem>>, vector<144x100xf32>
    %cst = arith.constant dense<0.000000e+00> : vector<16x100xf32>
    %2 = tpu.matmul %0, %1, %cst {dimension_numbers = #tpu.dot_dimension_numbers<[1], [0], [0], [1], [0, 0, 1, 1], [], []>} : vector<16x144xf32>, vector<144x100xf32>, vector<16x100xf32> -> vector<16x100xf32>
    %c0_3 = arith.constant 0 : index
    %c0_4 = arith.constant 0 : index
    %3 = vector.load %arg2[%c0_3, %c0_4] : memref<16x1xf32, #tpu.memory_space<vmem>>, vector<16x1xf32>
    %4 = vector.broadcast %3 : vector<16x1xf32> to vector<16x100xf32>
    %5 = arith.addf %2, %4 : vector<16x100xf32>
    %c0_5 = arith.constant 0 : index
    %c0_6 = arith.constant 0 : index
    %6 = vector.load %arg3[%c0_5, %c0_6] : memref<16x100xf32, #tpu.memory_space<vmem>>, vector<16x100xf32>
    tpu.vector_store %arg3[%c0_5, %c0_6], %5 {strides = array<i32>} : memref<16x100xf32, #tpu.memory_space<vmem>>, vector<16x100xf32>,
    return
  }
}

</mosaic_0001>

<llo_original>
// kernel: model_forward.1
$region0: #{model_forward.1}
  #allocation0 [shape = 'u32[]', space=smem, size = 0x4, offset = 0x4, fixed_abs, tag = 'smem constant byte address 0x4 - core index']
  #allocation1 [shape = 'u32[144,128]{1,0:T(1,128)}', space=vmem, size = 0x12000, scoped, tag = 'internal scratch']
  %s0 = inlined_call_operand.vmem [shape: f32[16,144], index: 0, kind: input, shape index: {}]
  %s1 = inlined_call_operand.vmem [shape: f32[144,100], index: 1, kind: input, shape index: {}]
  %s2 = inlined_call_operand.vmem [shape: f32[16,1], index: 2, kind: input, shape index: {}]
  %s3 = inlined_call_operand.vmem [shape: f32[16,100], index: 3, kind: output, shape index: {}]
  %s4 = sld [smem:[#allocation0]]
  $region22: #{model_forward.1} parent=0
    _
  %s6 = ssub.s32 1, %s4
  %s7 = scalar_select 0, %s6, %s4
  // Predicated region
  $region2: #{model_forward.1} parent=0 // pred_check
    _
  $region3: #{model_forward.1} parent=0 // pred_check_branch
    %9 = sbr.rel (0) target = $region5
  $region4: #{model_forward.1} parent=0 // pred_region
    _
  $region5: #{model_forward.1} parent=0 // pred_fallthru
    _
  // Predicated region
  $region6: #{model_forward.1} parent=0 // pred_check
    _
  $region7: #{model_forward.1} parent=0 // pred_check_branch
    %11 = sbr.rel (0) target = $region9
  $region8: #{model_forward.1} parent=0 // pred_region
    _
  $region9: #{model_forward.1} parent=0 // pred_fallthru
    _
  // Predicated region
  $region10: #{model_forward.1} parent=0 // pred_check
    _
  $region11: #{model_forward.1} parent=0 // pred_check_branch
    %13 = sbr.rel (0) target = $region13
  $region12: #{model_forward.1} parent=0 // pred_region
    _
  $region13: #{model_forward.1} parent=0 // pred_fallthru
    _
  %v14 = vld [vmem:[%s0] sm:$0xff]
  %v15 = vld [vmem:[%s0 + $0x8] sm:$0xff]
  %v16 = vld [vmem:[%s0 + $0x10] sm:$0xff]
  %v17 = vld [vmem:[%s0 + $0x18] sm:$0xff]
  %v18 = vld [vmem:[%s1] sm:$0xff]
  %v19 = vld [vmem:[%s1 + $0x8] sm:$0xff]
  %v20 = vld [vmem:[%s1 + $0x10] sm:$0xff]
  %v21 = vld [vmem:[%s1 + $0x18] sm:$0xff]
  %v22 = vld [vmem:[%s1 + $0x20] sm:$0xff]
  %v23 = vld [vmem:[%s1 + $0x28] sm:$0xff]
  %v24 = vld [vmem:[%s1 + $0x30] sm:$0xff]
  %v25 = vld [vmem:[%s1 + $0x38] sm:$0xff]
  %v26 = vld [vmem:[%s1 + $0x40] sm:$0xff]
  %v27 = vld [vmem:[%s1 + $0x48] sm:$0xff]
  %v28 = vld [vmem:[%s1 + $0x50] sm:$0xff]
  %v29 = vld [vmem:[%s1 + $0x58] sm:$0xff]
  %v30 = vld [vmem:[%s1 + $0x60] sm:$0xff]
  %v31 = vld [vmem:[%s1 + $0x68] sm:$0xff]
  %v32 = vld [vmem:[%s1 + $0x70] sm:$0xff]
  %v33 = vld [vmem:[%s1 + $0x78] sm:$0xff]
  %v34 = vld [vmem:[%s1 + $0x80] sm:$0xff]
  %v35 = vld [vmem:[%s1 + $0x88] sm:$0xff]
  %v36 = vld [vmem:[%s2] sm:$0xff]
  %v37 = vld [vmem:[%s2 + $0x8] sm:$0xff]
  %39 = vset.pattern.permute.xlu0 0
  %40 = vperm.xlu0 %39, %v36
  %v41 = vpop.permute.xlu0 %40
  %44 = vset.pattern.permute.xlu0 0
  %45 = vperm.xlu0 %44, %v37
  %v46 = vpop.permute.xlu0 %45
  %vm48 = vcmask 130048
  %v50 = vsel %vm48, %v15, 0
  %v53 = vsel %vm48, %v17, 0
  %55 = vmatprep.subr.mxu0 0.0
  %56 = vmatpush1.msra.mxu0 %v18
  %57 = vmatprep.subr.mxu0 0.0
  %58 = vmatpush1.msra.mxu0 %v19
  %59 = vmatprep.subr.mxu0 0.0
  %60 = vmatpush1.msra.mxu0 %v20
  %61 = vmatprep.subr.mxu0 0.0
  %62 = vmatpush1.msra.mxu0 %v21
  %63 = vmatprep.subr.mxu0 0.0
  %64 = vmatpush1.msra.mxu0 %v22
  %65 = vmatprep.subr.mxu0 0.0
  %66 = vmatpush1.msra.mxu0 %v23
  %67 = vmatprep.subr.mxu0 0.0
  %68 = vmatpush1.msra.mxu0 %v24
  %69 = vmatprep.subr.mxu0 0.0
  %70 = vmatpush1.msra.mxu0 %v25
  %71 = vmatprep.subr.mxu0 0.0
  %72 = vmatpush1.msra.mxu0 %v26
  %73 = vmatprep.subr.mxu0 0.0
  %74 = vmatpush1.msra.mxu0 %v27
  %75 = vmatprep.subr.mxu0 0.0
  %76 = vmatpush1.msra.mxu0 %v28
  %77 = vmatprep.subr.mxu0 0.0
  %78 = vmatpush1.msra.mxu0 %v29
  %79 = vmatprep.subr.mxu0 0.0
  %80 = vmatpush1.msra.mxu0 %v30
  %81 = vmatprep.subr.mxu0 0.0
  %82 = vmatpush1.msra.mxu0 %v31
  %83 = vmatprep.subr.mxu0 0.0
  %84 = vmatpush1.msra.mxu0 %v32
  %85 = vmatprep.subr.mxu0 0.0
  %86 = vmatpush1.msra.mxu0 %v33
  %87 = vmatprep.subr.mxu0 0.0
  %88 = vmatpush1.msra.mxu0 %v34
  %89 = vmatprep.subr.mxu0 0.0
  %90 = vmatpush1.msra.mxu0 %v35
  %91 = vmatprep.subr.mxu0 0.0
  %92 = vmatpush1.msra.mxu0 0.0
  %93 = vmatprep.subr.mxu0 0.0
  %94 = vmatpush1.msra.mxu0 0.0
  %95 = vmatprep.subr.mxu0 0.0
  %96 = vmatpush1.msra.mxu0 0.0
  %97 = vmatprep.subr.mxu0 0.0
  %98 = vmatpush1.msra.mxu0 0.0
  %99 = vmatprep.subr.mxu0 0.0
  %100 = vmatpush1.msra.mxu0 0.0
  %101 = vmatprep.subr.mxu0 0.0
  %102 = vmatpush1.msra.mxu0 0.0
  %103 = vmatprep.subr.mxu0 0.0
  %104 = vmatpush1.msra.mxu0 0.0
  %105 = vmatprep.subr.mxu0 0.0
  %106 = vmatpush1.msra.mxu0 0.0
  %107 = vmatprep.subr.mxu0 0.0
  %108 = vmatpush1.msra.mxu0 0.0
  %109 = vmatprep.subr.mxu0 0.0
  %110 = vmatpush1.msra.mxu0 0.0
  %111 = vmatprep.subr.mxu0 0.0
  %112 = vmatpush1.msra.mxu0 0.0
  %113 = vmatprep.subr.mxu0 0.0
  %114 = vmatpush1.msra.mxu0 0.0
  %115 = vmatprep.subr.mxu0 0.0
  %116 = vmatpush1.msra.mxu0 0.0
  %117 = vmatprep.subr.mxu0 0.0
  %118 = vmatpush1.msra.mxu0 0.0
  %119 = vmatprep.mubr.f32.mxu0 %v50
  %120 = vmatmul.mubr.f32.gmra.mrb[0].mxu0 %v14
  %v121 = vpop.f32.mrb[0].mxu0
  %v122 = vadd.f32 %v41, %v121
  %v123 = vpop.f32.mrb[0].mxu0
  %124 = vmatprep.mubr.f32.mxu0 %v53
  %125 = vmatmul.mubr.f32.gmra.mrb[0].mxu0 %v16
  %v126 = vpop.f32.mrb[0].mxu0
  %v127 = vadd.f32 %v46, %v126
  %v128 = vpop.f32.mrb[0].mxu0
  %129 = vdwg.mxu0
  %vm130 = vcmask 818176
  %131 = vst.msk [vmem:[%s3] sm:$0xff] %vm130, %v122
  %132 = vst.msk [vmem:[%s3 + $0x8] sm:$0xff] %vm130, %v127
  // Predicated region
  $region14: #{model_forward.1} parent=0 // pred_check
    _
  $region15: #{model_forward.1} parent=0 // pred_check_branch
    %134 = sbr.rel (0) target = $region17
  $region16: #{model_forward.1} parent=0 // pred_region
    _
  $region17: #{model_forward.1} parent=0 // pred_fallthru
    _
  // Predicated region
  $region18: #{model_forward.1} parent=0 // pred_check
    _
  $region19: #{model_forward.1} parent=0 // pred_check_branch
    %136 = sbr.rel (0) target = $region21
  $region20: #{model_forward.1} parent=0 // pred_region
    _
  $region21: #{model_forward.1} parent=0 // pred_fallthru
    _

</llo_original>
